<compile_context>
chip_gen: v6e
topology: v6e:2x2x1
jax: 0.10.0
libtpu: 0.0.40
codegen_flags: <defaults>
</compile_context>

<pallas_src>
import functools

import numpy as np
import jax
import jax.numpy as jnp
from jax import lax
from jax.experimental import pallas as pl
from jax.experimental.pallas import tpu as pltpu


def _build_smooth_matrix(num_classes, std, num_samples):
    """L[y, c] = smoothed label weight of class c given label y.

    Literal re-implementation of GaussSmoothLoss.original_gauss_label applied to the
    identity label matrix (the 1/(sigma*sqrt(2*pi)) of norm.pdf cancels in / sum)."""
    h = int(np.floor(num_samples / 2))
    L = np.eye(num_classes, dtype=np.float64)
    for elem in range(num_classes):
        pts = np.linspace(elem - h, elem + h, num_samples)
        samples = np.exp(-(pts - elem) ** 2 / (2.0 * float(std) ** 2))
        norm_s = samples / samples.sum()
        if elem - h < 0:                               # left edge: truncate below class 0
            fz = int(np.where(pts == 0)[0][0])
            for i in range(fz, num_samples):
                L[elem, i - fz] = norm_s[i]
        elif elem + h > 191:                           # right edge (hard-coded 191/192)
            fm = int(np.where(pts == 192)[0][0])
            for i in range(fm):
                L[elem, elem - int(h + i)] = norm_s[i]
        else:                                          # interior
            for i in range(num_samples):
                L[elem, int(elem - h + i)] = norm_s[i]
    return L.astype(np.float32)


def _gauss_ce_kernel(lab_ref, x_ref, L_ref, out_ref, acc_ref, *,
                     n_total, blocks_per_core, block_rows):
    p = pl.program_id(0)          # parallel (core) axis
    j = pl.program_id(1)          # arbitrary (reduction) axis

    @pl.when(j == 0)
    def _():
        acc_ref[...] = jnp.zeros_like(acc_ref)

    x = x_ref[...].astype(jnp.float32)            # (TN, C) upcast in VMEM
    y = lab_ref[...]                              # (TN, 1) int32 class indices
    tn, c = x.shape

    # ---- row validity (clamped duplicate blocks + overhanging rows of last block) ------
    blk = p * blocks_per_core + j                 # un-clamped logical block id
    rows = blk * block_rows + lax.broadcasted_iota(jnp.int32, (tn, 1), 0)
    valid = rows < n_total                        # (TN, 1)

    # ---- gaussian label via the idle MXU: one-hot @ resident smoothing matrix ----------
    col = lax.broadcasted_iota(jnp.int32, (tn, c), 1)
    one_hot = (col == y).astype(jnp.float32)      # (TN, C)
    label = jnp.dot(one_hot, L_ref[...], preferred_element_type=jnp.float32)

    # ---- log-softmax --------------------------------------------------------------------
    m = jnp.max(x, axis=-1, keepdims=True)
    e = jnp.exp(x - m)
    lse = jnp.log(jnp.sum(e, axis=-1, keepdims=True)) + m
    logp = x - lse

    # Single mask application; also keeps NaN/Inf garbage of padded rows out of the sum.
    # Sign and loss_weight / N are applied in the wrapper.
    contrib = jnp.where(valid, label * logp, 0.0)                # (TN, C)
    # (8, C) accumulator: pure vreg slab adds; sublane reduce deferred to the epilogue.
    acc_ref[...] += contrib.reshape(tn // 8, 8, c).sum(axis=0)

    @pl.when(j == pl.num_programs(1) - 1)
    def _():
        total = jnp.sum(acc_ref[...])             # one cross-lane/sublane reduce per core
        r = lax.broadcasted_iota(jnp.int32, out_ref.shape, 0)
        q = lax.broadcasted_iota(jnp.int32, out_ref.shape, 1)
        out_ref[...] = jnp.where((r == 0) & (q == 0), total, 0.0)


def _default_num_parallel():
    try:
        kind = jax.devices()[0].device_kind.lower()
    except Exception:
        return 1
    # Single-TensorCore (or non-megacore) parts: the parallel split is pure overhead.
    if any(tag in kind for tag in ("lite", "v5e", "v6e", "v2", "v3")):
        return 1
    return 2   # v4 / v5p megacore, v7x dual-TC


def gauss_smooth_loss(cls_score, label, *, std, num_samples, num_classes=None,
                      loss_weight=1.0, reduction="mean", block_rows=None,
                      num_parallel=None):
    n, c = cls_score.shape
    if num_classes is not None:
        assert num_classes == c, (num_classes, c)
    # original_gauss_label hard-codes the 191/192 class boundary -> requires C == 192.
    assert c == 192, f"GaussSmoothLoss gauss label assumes 192 classes, got {c}"
    assert reduction in ("mean", "sum")
    h = num_samples // 2
    assert num_samples == 2 * h + 1 and h >= 1, "num_samples must be odd and >= 3"

    lab = label.reshape(n, 1).astype(jnp.int32)
    L = jnp.asarray(_build_smooth_matrix(c, std, num_samples))   # (C, C) f32 constant

    itemsize = jnp.dtype(cls_score.dtype).itemsize
    if block_rows is None:
        block_rows = 2048 if itemsize >= 4 else 4096
    P = _default_num_parallel() if num_parallel is None else max(1, int(num_parallel))

    # ---- tiling: large row slabs, capped by an explicit VMEM budget ---------------------
    row_align = 8 if itemsize >= 4 else 16
    lane_c = ((c + 127) // 128) * 128              # 192 -> 256 lane padding of f32 temps
    # Real VMEM driver: ~6 live (tn, 256) f32 intermediates + double-buffered input block.
    # 40 MiB working budget keeps v7x (64 MiB physical / TC) comfortable; also fine on
    # v5e / v6e (128 MiB).
    vmem_budget = 40 << 20
    bytes_per_row = 6 * lane_c * 4 + 2 * c * itemsize
    fixed = 2 * c * c * 4 + (1 << 20)              # resident L (double-buffered) + slack
    cap = max(row_align,
              ((vmem_budget - fixed) // bytes_per_row) // row_align * row_align)

    rows_per_core = pl.cdiv(n, P)
    tn = min(int(block_rows), cap,
             ((rows_per_core + row_align - 1) // row_align) * row_align)
    tn = max(row_align, (tn // row_align) * row_align)
    total_blocks = pl.cdiv(n, tn)
    bpc = pl.cdiv(total_blocks, P)                 # blocks per core

    def in_idx(p, j):
        # Clamp fully out-of-range grid points onto an in-bounds block; their rows are
        # masked out inside the kernel so they contribute zero.
        return (jnp.minimum(p * bpc + j, total_blocks - 1), 0)

    kernel = functools.partial(_gauss_ce_kernel, n_total=n,
                               blocks_per_core=bpc, block_rows=tn)

    partials = pl.pallas_call(
        kernel,
        out_shape=jax.ShapeDtypeStruct((P * 8, 128), jnp.float32),
        grid=(P, bpc),
        in_specs=[
            pl.BlockSpec((tn, 1), in_idx),                 # labels
            pl.BlockSpec((tn, c), in_idx),                 # cls_score (dtype passthrough)
            pl.BlockSpec((c, c), lambda p, j: (0, 0)),     # smoothing matrix, VMEM-resident
        ],
        out_specs=pl.BlockSpec((8, 128), lambda p, j: (p, 0)),
        scratch_shapes=[pltpu.VMEM((8, c), jnp.float32)],
        compiler_params=pltpu.CompilerParams(
            dimension_semantics=("parallel", "arbitrary"),
            vmem_limit_bytes=48 << 20),
    )(lab, cls_score, L)

    denom = float(n) if reduction == "mean" else 1.0
    return (-loss_weight / denom) * jnp.sum(partials)


def _reference_loss(cls_score, label_idx, std, num_samples, num_classes, loss_weight,
                    reduction="mean"):
    """Literal numpy re-implementation of the PyTorch module (loop-based)."""
    n = label_idx.shape[0]
    h = int(np.floor(num_samples / 2))
    one_hot = np.zeros((n, num_classes), np.float64)
    one_hot[np.arange(n), label_idx] = 1.0
    g = one_hot.copy()
    for idx, elem in enumerate(label_idx.tolist()):
        pts = np.linspace(elem - h, elem + h, num_samples)
        samples = np.exp(-(pts - elem) ** 2 / (2.0 * std ** 2))   # norm.pdf up to const
        norm_s = samples / samples.sum()
        if elem - h < 0:
            fz = int(np.where(pts == 0)[0][0])
            for i in range(fz, num_samples):
                g[idx, i - fz] = norm_s[i]
        elif elem + h > 191:
            fm = int(np.where(pts == 192)[0][0])
            for i in range(fm):
                g[idx, elem - int(h + i)] = norm_s[i]
        else:
            for i in range(num_samples):
                g[idx, int(elem - h + i)] = norm_s[i]
    x = cls_score.astype(np.float64)
    m = x.max(-1, keepdims=True)
    logp = x - (np.log(np.exp(x - m).sum(-1, keepdims=True)) + m)
    loss = -(g * logp).sum(-1)
    loss = loss.mean() if reduction == "mean" else loss.sum()
    return loss_weight * loss


if __name__ == "__main__":
    C = 192                      # the module's hard-coded 191/192 boundary implies C=192
    STD, NUM_SAMPLES = 2, 5
    LOSS_WEIGHT = 1.0

    key = jax.random.PRNGKey(0)

    # --- test 1: f32, branch coverage (left edge / interior / right edge) ---------------
    N = 16
    k1, k2, key = jax.random.split(key, 3)
    cls_score = jax.random.normal(k1, (N, C), jnp.float32)
    label = jax.random.randint(k2, (N,), 0, C, jnp.int32)
    label = label.at[0].set(0).at[1].set(1).at[2].set(96).at[3].set(190).at[4].set(191)
    loss = gauss_smooth_loss(cls_score, label, std=STD, num_samples=NUM_SAMPLES,
                             num_classes=C, loss_weight=LOSS_WEIGHT, reduction="mean")
    loss = jax.block_until_ready(loss)
    ref = _reference_loss(np.asarray(cls_score), np.asarray(label), STD, NUM_SAMPLES,
                          C, LOSS_WEIGHT, reduction="mean")
    assert np.allclose(np.asarray(loss), ref, rtol=1e-5, atol=1e-5), (float(loss), ref)

    # --- test 2: f32, N not divisible by the row tile (masked partial block) ------------
    N2 = 13
    k1, k2, key = jax.random.split(key, 3)
    cls2 = jax.random.normal(k1, (N2, C), jnp.float32)
    lab2 = jax.random.randint(k2, (N2,), 0, C, jnp.int32)
    lab2 = lab2.at[0].set(0).at[1].set(191)
    loss2 = gauss_smooth_loss(cls2, lab2, std=STD, num_samples=NUM_SAMPLES,
                              num_classes=C, loss_weight=LOSS_WEIGHT, reduction="mean")
    loss2 = jax.block_until_ready(loss2)
    ref2 = _reference_loss(np.asarray(cls2), np.asarray(lab2), STD, NUM_SAMPLES,
                           C, LOSS_WEIGHT, reduction="mean")
    assert np.allclose(np.asarray(loss2), ref2, rtol=1e-5, atol=1e-5), (float(loss2), ref2)

    # --- test 3: bf16 input passthrough + 'sum' reduction --------------------------------
    N3 = 32
    k1, k2, key = jax.random.split(key, 3)
    cls3 = jax.random.normal(k1, (N3, C), jnp.float32).astype(jnp.bfloat16)
    lab3 = jax.random.randint(k2, (N3,), 0, C, jnp.int32)
    lab3 = lab3.at[0].set(0).at[1].set(190)
    loss3 = gauss_smooth_loss(cls3, lab3, std=STD, num_samples=NUM_SAMPLES,
                              num_classes=C, loss_weight=LOSS_WEIGHT, reduction="sum")
    loss3 = jax.block_until_ready(loss3)
    ref3 = _reference_loss(np.asarray(cls3.astype(jnp.float32)), np.asarray(lab3),
                           STD, NUM_SAMPLES, C, LOSS_WEIGHT, reduction="sum")
    assert np.allclose(np.asarray(loss3), ref3, rtol=1e-5, atol=1e-4), (float(loss3), ref3)

    print("KERNEL_OK")
</pallas_src>

<mosaic_0001>
module attributes {stable_mosaic.version = 11 : i64} {
  func.func @_gauss_ce_kernel(%arg0: i32, %arg1: i32, %arg2: memref<8x1xi32, #tpu.memory_space<vmem>>, %arg3: memref<8x192xf32, #tpu.memory_space<vmem>>, %arg4: memref<192x192xf32, #tpu.memory_space<vmem>>, %arg5: memref<8x128xf32, #tpu.memory_space<vmem>>, %arg6: memref<8x192xf32, #tpu.memory_space<vmem>>) attributes {dimension_semantics = [#tpu.dimension_semantics<parallel>, #tpu.dimension_semantics<arbitrary>], iteration_bounds = array<i64: 2, 1>, scalar_prefetch = 0 : i64, scratch_operands = 1 : i64, tpu.core_type = #tpu.core_type<tc>, window_params = [{transform_indices = @transform_0, window_bounds = array<i64: 8, 1>}, {transform_indices = @transform_1, window_bounds = array<i64: 8, 192>}, {pipeline_mode = #tpu.pipeline_mode<synchronous>, transform_indices = @transform_2, window_bounds = array<i64: 192, 192>}, {transform_indices = @transform_3, window_bounds = array<i64: 8, 128>}]} {
    %c0_i32 = arith.constant 0 : i32
    %0 = arith.cmpi eq, %arg1, %c0_i32 : i32
    %1 = arith.extui %0 : i1 to i32
    %c0_i32_0 = arith.constant 0 : i32
    %2 = arith.cmpi ne, %1, %c0_i32_0 : i32
    scf.if %2 {
      %cst_16 = arith.constant 0.000000e+00 : f32
      %44 = vector.broadcast %cst_16 : f32 to vector<8x192xf32>
      %c0_17 = arith.constant 0 : index
      %c0_18 = arith.constant 0 : index
      %45 = vector.load %arg6[%c0_17, %c0_18] : memref<8x192xf32, #tpu.memory_space<vmem>>, vector<8x192xf32>
      tpu.vector_store %arg6[%c0_17, %c0_18], %44 {strides = array<i32>} : memref<8x192xf32, #tpu.memory_space<vmem>>, vector<8x192xf32>,
    } else {
    }
    %c0 = arith.constant 0 : index
    %c0_1 = arith.constant 0 : index
    %3 = vector.load %arg3[%c0, %c0_1] : memref<8x192xf32, #tpu.memory_space<vmem>>, vector<8x192xf32>
    %c0_2 = arith.constant 0 : index
    %c0_3 = arith.constant 0 : index
    %4 = vector.load %arg2[%c0_2, %c0_3] : memref<8x1xi32, #tpu.memory_space<vmem>>, vector<8x1xi32>
    %c1_i32 = arith.constant 1 : i32
    %5 = arith.muli %arg0, %c1_i32 : i32
    %6 = arith.addi %5, %arg1 : i32
    %c8_i32 = arith.constant 8 : i32
    %7 = arith.muli %6, %c8_i32 : i32
    %8 = tpu.iota {dimensions = array<i32: 0>} : vector<8x1xi32>
    %9 = vector.broadcast %7 : i32 to vector<8x1xi32>
    %10 = arith.addi %9, %8 : vector<8x1xi32>
    %c16_i32 = arith.constant 16 : i32
    %11 = vector.broadcast %c16_i32 : i32 to vector<8x1xi32>
    %12 = arith.cmpi slt, %10, %11 : vector<8x1xi32>
    %13 = tpu.iota {dimensions = array<i32: 1>} : vector<8x192xi32>
    %14 = vector.broadcast %4 : vector<8x1xi32> to vector<8x192xi32>
    %15 = arith.cmpi eq, %13, %14 : vector<8x192xi32>
    %16 = arith.extui %15 : vector<8x192xi1> to vector<8x192xi32>
    %17 = arith.sitofp %16 : vector<8x192xi32> to vector<8x192xf32>
    %c0_4 = arith.constant 0 : index
    %c0_5 = arith.constant 0 : index
    %18 = vector.load %arg4[%c0_4, %c0_5] : memref<192x192xf32, #tpu.memory_space<vmem>>, vector<192x192xf32>
    %cst = arith.constant dense<0.000000e+00> : vector<8x192xf32>
    %19 = tpu.matmul %17, %18, %cst {dimension_numbers = #tpu.dot_dimension_numbers<[1], [0], [0], [1], [0, 0, 1, 1], [], []>} : vector<8x192xf32>, vector<192x192xf32>, vector<8x192xf32> -> vector<8x192xf32>
    %cst_6 = arith.constant dense<0xFF800000> : vector<8xf32>
    %20 = vector.multi_reduction <maximumf>, %3, %cst_6 [1] : vector<8x192xf32> to vector<8xf32>
    %21 = vector.shape_cast %20 : vector<8xf32> to vector<8x1xf32>
    %22 = vector.broadcast %21 : vector<8x1xf32> to vector<8x192xf32>
    %23 = arith.subf %3, %22 : vector<8x192xf32>
    %24 = math.exp %23 : vector<8x192xf32>
    %cst_7 = arith.constant dense<0.000000e+00> : vector<8xf32>
    %25 = vector.multi_reduction <add>, %24, %cst_7 [1] : vector<8x192xf32> to vector<8xf32>
    %26 = vector.shape_cast %25 : vector<8xf32> to vector<8x1xf32>
    %27 = math.log %26 : vector<8x1xf32>
    %28 = arith.addf %27, %21 : vector<8x1xf32>
    %29 = vector.broadcast %28 : vector<8x1xf32> to vector<8x192xf32>
    %30 = arith.subf %3, %29 : vector<8x192xf32>
    %31 = arith.mulf %19, %30 : vector<8x192xf32>
    %cst_8 = arith.constant 0.000000e+00 : f32
    %32 = vector.shape_cast %12 : vector<8x1xi1> to vector<8x1xi1>
    %33 = vector.broadcast %32 : vector<8x1xi1> to vector<8x192xi1>
    %34 = vector.broadcast %cst_8 : f32 to vector<8x192xf32>
    %35 = arith.select %33, %31, %34 : vector<8x192xi1>, vector<8x192xf32>
    %c0_9 = arith.constant 0 : index
    %c0_10 = arith.constant 0 : index
    %36 = vector.load %arg6[%c0_9, %c0_10] : memref<8x192xf32, #tpu.memory_space<vmem>>, vector<8x192xf32>
    %37 = vector.shape_cast %35 : vector<8x192xf32> to vector<1x8x192xf32>
    %cst_11 = arith.constant dense<0.000000e+00> : vector<8x192xf32>
    %38 = vector.multi_reduction <add>, %37, %cst_11 [0] : vector<1x8x192xf32> to vector<8x192xf32>
    %39 = arith.addf %36, %38 : vector<8x192xf32>
    %c0_12 = arith.constant 0 : index
    %c0_13 = arith.constant 0 : index
    %40 = vector.load %arg6[%c0_12, %c0_13] : memref<8x192xf32, #tpu.memory_space<vmem>>, vector<8x192xf32>
    tpu.vector_store %arg6[%c0_12, %c0_13], %39 {strides = array<i32>} : memref<8x192xf32, #tpu.memory_space<vmem>>, vector<8x192xf32>,
    %c0_i32_14 = arith.constant 0 : i32
    %41 = arith.cmpi eq, %arg1, %c0_i32_14 : i32
    %42 = arith.extui %41 : i1 to i32
    %c0_i32_15 = arith.constant 0 : i32
    %43 = arith.cmpi ne, %42, %c0_i32_15 : i32
    scf.if %43 {
      %c0_16 = arith.constant 0 : index
      %c0_17 = arith.constant 0 : index
      %44 = vector.load %arg6[%c0_16, %c0_17] : memref<8x192xf32, #tpu.memory_space<vmem>>, vector<8x192xf32>
      %45 = vector.shape_cast %44 : vector<8x192xf32> to vector<1x8x192xf32>
      %cst_18 = arith.constant dense<0.000000e+00> : vector<1xf32>
      %46 = vector.multi_reduction <add>, %45, %cst_18 [1, 2] : vector<1x8x192xf32> to vector<1xf32>
      %47 = vector.shape_cast %46 : vector<1xf32> to vector<1x1x1xf32>
      %48 = vector.extract %47[0, 0, 0] : f32 from vector<1x1x1xf32>
      %49 = tpu.iota {dimensions = array<i32: 0>} : vector<8x128xi32>
      %50 = tpu.iota {dimensions = array<i32: 1>} : vector<8x128xi32>
      %c0_i32_19 = arith.constant 0 : i32
      %51 = vector.broadcast %c0_i32_19 : i32 to vector<8x128xi32>
      %52 = arith.cmpi eq, %49, %51 : vector<8x128xi32>
      %c0_i32_20 = arith.constant 0 : i32
      %53 = vector.broadcast %c0_i32_20 : i32 to vector<8x128xi32>
      %54 = arith.cmpi eq, %50, %53 : vector<8x128xi32>
      %55 = arith.andi %52, %54 : vector<8x128xi1>
      %cst_21 = arith.constant 0.000000e+00 : f32
      %56 = vector.broadcast %48 : f32 to vector<8x128xf32>
      %57 = vector.broadcast %cst_21 : f32 to vector<8x128xf32>
      %58 = arith.select %55, %56, %57 : vector<8x128xi1>, vector<8x128xf32>
      %c0_22 = arith.constant 0 : index
      %c0_23 = arith.constant 0 : index
      %59 = vector.load %arg5[%c0_22, %c0_23] : memref<8x128xf32, #tpu.memory_space<vmem>>, vector<8x128xf32>
      tpu.vector_store %arg5[%c0_22, %c0_23], %58 {strides = array<i32>} : memref<8x128xf32, #tpu.memory_space<vmem>>, vector<8x128xf32>,
    } else {
    }
    return
  }
  func.func @transform_0(%arg0: i32, %arg1: i32) -> (i32, i32) {
    %c1_i32 = arith.constant 1 : i32
    %0 = arith.muli %arg0, %c1_i32 : i32
    %1 = arith.addi %0, %arg1 : i32
    %c1_i32_0 = arith.constant 1 : i32
    %2 = arith.minsi %1, %c1_i32_0 : i32
    %c0_i32 = arith.constant 0 : i32
    %c0_i32_1 = arith.constant 0 : i32
    return %2, %c0_i32 : i32, i32
  }
  func.func @transform_1(%arg0: i32, %arg1: i32) -> (i32, i32) {
    %c1_i32 = arith.constant 1 : i32
    %0 = arith.muli %arg0, %c1_i32 : i32
    %1 = arith.addi %0, %arg1 : i32
    %c1_i32_0 = arith.constant 1 : i32
    %2 = arith.minsi %1, %c1_i32_0 : i32
    %c0_i32 = arith.constant 0 : i32
    %c0_i32_1 = arith.constant 0 : i32
    return %2, %c0_i32 : i32, i32
  }
  func.func @transform_2(%arg0: i32, %arg1: i32) -> (i32, i32) {
    %c0_i32 = arith.constant 0 : i32
    %c0_i32_0 = arith.constant 0 : i32
    %c0_i32_1 = arith.constant 0 : i32
    return %c0_i32, %c0_i32_0 : i32, i32
  }
  func.func @transform_3(%arg0: i32, %arg1: i32) -> (i32, i32) {
    %c0_i32 = arith.constant 0 : i32
    %c0_i32_0 = arith.constant 0 : i32
    return %arg0, %c0_i32 : i32, i32
  }
}

</mosaic_0001>

<llo_original>
// kernel: tpu_custom_call.1
$region0: #{tpu_custom_call.1}
  #allocation0 [shape = 'u32[]', space=smem, size = 0x4, offset = 0x4, fixed_abs, tag = 'smem constant byte address 0x4 - core index']
  #allocation1 [shape = 'u32[144,128]{1,0:T(1,128)}', space=vmem, size = 0x12000, scoped, tag = 'internal scratch']
  #allocation2 [shape = 'f32[8,192]{1,0:T(8,128)}', space=vmem, size = 0x2000, scoped, tag = 'scratch operand']
  %s0 = inlined_call_operand.vmem [shape: s32[16,1], index: 0, kind: input, shape index: {}]
  %s1 = inlined_call_operand.hbm [shape: f32[16,192], index: 1, kind: input, shape index: {}]
  %s2 = inlined_call_operand.hbm [shape: f32[192,192], index: 2, kind: input, shape index: {}]
  %s3 = inlined_call_operand.hbm [shape: f32[16,128], index: 3, kind: output, shape index: {}]
  %s4 = sld [smem:[#allocation0]]
  $region61: #{tpu_custom_call.1} parent=0
    _
  %s6 = ssub.s32 1, %s4
  %s7 = scalar_select 0, %s6, %s4
  $region1: #{tpu_custom_call.1} parent=0
    #allocation3 [shape = 'u8[16384]{0}', space=vmem, size = 0x4000, scoped, tag = 'input window, operand 1']
    #allocation4 [shape = 's32[2]{0}', space=sflag, size = 0x8, scoped, tag = 'scoped memory for tpu_custom_call.1']
    #allocation5 [shape = 's32[2]{0}', space=sflag, size = 0x8, scoped, tag = 'scoped memory for tpu_custom_call.1']
    #allocation6 [shape = 'u8[196608]{0}', space=vmem, size = 0x30000, scoped, tag = 'input window, operand 2, single buffered']
    #allocation7 [shape = 's32[1]{0}', space=sflag, size = 0x4, scoped, tag = 'scoped memory for tpu_custom_call.1']
    #allocation8 [shape = 'u8[8192]{0}', space=vmem, size = 0x2000, scoped, tag = 'output window, operand 0']
    %8 = vsyncpa [#allocation4], 0
    %s9 = scalar_lea.sflag [#allocation4], 1
    %10 = vsyncpa %s9, 0
    %11 = vsyncpa [#allocation7], 0
    %12 = vsyncpa [#allocation5], 0
    %s13 = scalar_lea.sflag [#allocation5], 1
    %14 = vsyncpa %s13, 0
    loop: start=0, step=1, limit=4
    $region2: #{tpu_custom_call.1} parent=1 // loop_pre_header
      _
    $region3: #{tpu_custom_call.1} parent=1 // loop_header
      %s16 = sphi 0, %s20
      %p17 = scmp.ge.s32.totalorder %s16, 4
      %s23 = sphi 0, %s35
      %s24 = sphi 0, %s31
      %s25 = sphi 0, %s23
      %s26 = sphi 0, %s24
      %s27 = sphi 0, %s25
      %s28 = sphi 0, %s26
      %s44 = sphi 0, %s46
      %s47 = sphi 0, %s44
      %s48 = sphi 0, %s47
      %s64 = sphi 0, %s48
      %s76 = sphi 0, %s78
      %s79 = sphi 0, %s76
      %s80 = sphi 0, %s79
      %s96 = sphi 0, %s80
      %s100 = sphi 0, %s100
      %s102 = sphi 0, %s100
      %s103 = sphi 0, %s102
      %s117 = sphi 0, %s103
      %s123 = sphi 0, %s125
      %s126 = sphi 0, %s123
      %s127 = sphi 0, %s126
      %s143 = sphi 0, %s127
    $region4: #{tpu_custom_call.1} parent=1 // loop_header_branch
      %19 = sbr.rel (%p17) target = $region8
    $region5: #{tpu_custom_call.1} parent=1 // loop_body
      %s21 = ssub.s32 %s16, 1
      %s22 = ssub.s32 %s16, 2
      %s29 = sadd.s32 1, %s24
      %p30 = scmp.ge.s32.totalorder %s29, 1
      %s31 = scalar_select %p30, 0, %s29
      %s32 = sadd.s32 1, %s23
      %s33 = scalar_select %p30, %s32, %s23
      %p34 = scmp.ge.s32.totalorder %s33, 2
      %s35 = scalar_select %p34, 0, %s33
      %s36 = sadd.s32 %s23, %s24
      %p37 = scmp.lt.s32.totalorder %s36, 1
      %s38 = scalar_select %p37, %s36, 1
      %s39 = sadd.s32 %s35, %s31
      %p40 = scmp.lt.s32.totalorder %s39, 1
      %s41 = scalar_select %p40, %s39, 1
      %s42 = ssub.s32 %s38, %s41
      %p43 = scmp.eq.s32.totalorder %s42, 0
      %s45 = sadd.s32 %s44, 1
      %s46 = scalar_select %p43, %s44, %s45
      %p49 = pneg %p43
      %p50 = scmp.eq.s32.totalorder %s16, 1
      %p51 = por %p49, %p50
      %p52 = scmp.ne.s32.totalorder %s44, %s47
      %p53 = scmp.eq.s32.totalorder %s16, 0
      %p54 = por %p52, %p53
      %p55 = scmp.ne.s32.totalorder %s44, %s47
      %p56 = scmp.eq.s32.totalorder %s21, 1
      %p57 = por %p55, %p56
      %p58 = scmp.ne.s32.totalorder %s47, %s48
      %p59 = scmp.eq.s32.totalorder %s21, 0
      %p60 = por %p58, %p59
      %p61 = scmp.ne.s32.totalorder %s47, %s48
      %p62 = scmp.eq.s32.totalorder %s22, 1
      %p63 = por %p61, %p62
      %p65 = scmp.ne.s32.totalorder %s48, %s64
      %p66 = scmp.eq.s32.totalorder %s22, 0
      %p67 = por %p65, %p66
      %s68 = sadd.s32 %s23, %s24
      %p69 = scmp.lt.s32.totalorder %s68, 1
      %s70 = scalar_select %p69, %s68, 1
      %s71 = sadd.s32 %s35, %s31
      %p72 = scmp.lt.s32.totalorder %s71, 1
      %s73 = scalar_select %p72, %s71, 1
      %s74 = ssub.s32 %s70, %s73
      %p75 = scmp.eq.s32.totalorder %s74, 0
      %s77 = sadd.s32 %s76, 1
      %s78 = scalar_select %p75, %s76, %s77
      %p81 = pneg %p75
      %p82 = scmp.eq.s32.totalorder %s16, 1
      %p83 = por %p81, %p82
      %p84 = scmp.ne.s32.totalorder %s76, %s79
      %p85 = scmp.eq.s32.totalorder %s16, 0
      %p86 = por %p84, %p85
      %p87 = scmp.ne.s32.totalorder %s76, %s79
      %p88 = scmp.eq.s32.totalorder %s21, 1
      %p89 = por %p87, %p88
      %p90 = scmp.ne.s32.totalorder %s79, %s80
      %p91 = scmp.eq.s32.totalorder %s21, 0
      %p92 = por %p90, %p91
      %p93 = scmp.ne.s32.totalorder %s79, %s80
      %p94 = scmp.eq.s32.totalorder %s22, 1
      %p95 = por %p93, %p94
      %p97 = scmp.ne.s32.totalorder %s80, %s96
      %p98 = scmp.eq.s32.totalorder %s22, 0
      %p99 = por %p97, %p98
      %s101 = sadd.s32 %s100, 1
      %p104 = scmp.eq.s32.totalorder %s16, 1
      %p105 = scmp.ne.s32.totalorder %s100, %s102
      %p106 = scmp.eq.s32.totalorder %s16, 0
      %p107 = por %p105, %p106
      %p108 = scmp.ne.s32.totalorder %s100, %s102
      %p109 = scmp.eq.s32.totalorder %s21, 1
      %p110 = por %p108, %p109
      %p111 = scmp.ne.s32.totalorder %s102, %s103
      %p112 = scmp.eq.s32.totalorder %s21, 0
      %p113 = por %p111, %p112
      %p114 = scmp.ne.s32.totalorder %s102, %s103
      %p115 = scmp.eq.s32.totalorder %s22, 1
      %p116 = por %p114, %p115
      %p118 = scmp.ne.s32.totalorder %s103, %s117
      %p119 = scmp.eq.s32.totalorder %s22, 0
      %p120 = por %p118, %p119
      %s121 = ssub.s32 %s23, %s35
      %p122 = scmp.eq.s32.totalorder %s121, 0
      %s124 = sadd.s32 %s123, 1
      %s125 = scalar_select %p122, %s123, %s124
      %p128 = pneg %p122
      %p129 = scmp.eq.s32.totalorder %s16, 1
      %p130 = por %p128, %p129
      %p131 = scmp.ne.s32.totalorder %s123, %s126
      %p132 = scmp.eq.s32.totalorder %s16, 0
      %p133 = por %p131, %p132
      %p134 = scmp.ne.s32.totalorder %s123, %s126
      %p135 = scmp.eq.s32.totalorder %s21, 1
      %p136 = por %p134, %p135
      %p137 = scmp.ne.s32.totalorder %s126, %s127
      %p138 = scmp.eq.s32.totalorder %s21, 0
      %p139 = por %p137, %p138
      %p140 = scmp.ne.s32.totalorder %s126, %s127
      %p141 = scmp.eq.s32.totalorder %s22, 1
      %p142 = por %p140, %p141
      %p144 = scmp.ne.s32.totalorder %s127, %s143
      %p145 = scmp.eq.s32.totalorder %s22, 0
      %p146 = por %p144, %p145
      %p147 = scmp.le.s32.totalorder 1, %s16
      %p148 = scmp.lt.s32.totalorder %s16, 3
      %p149 = pnand %p147, %p148
      %p150 = pneg %p149
      // Predicated region
      $region9: #{tpu_custom_call.1} parent=5 // pred_check
        _
      $region10: #{tpu_custom_call.1} parent=5 // pred_check_branch
        %152 = sbr.rel (%p149) target = $region12
      $region11: #{tpu_custom_call.1} parent=5 // pred_region
        %s153 = ssub.s32 %s16, 1
        // Predicated region
        $region13: #{tpu_custom_call.1} parent=11 // pred_check
          %p154 = pneg %p113
        $region14: #{tpu_custom_call.1} parent=11 // pred_check_branch
          %156 = sbr.rel (%p154) target = $region16
        $region15: #{tpu_custom_call.1} parent=11 // pred_region
          %s158 = ssub.s32 6144, 6144
          %159 = vsyncadd [#allocation7], %s158
          %s160 = sshll.u32 [#allocation6], 4
          %s161 = int_to_ptr.vmem [resolvable:$true] %s160
          %166 = dma.hbm_to_vmem [thread:$0]  %s2, 6144, %s161, [#allocation7], 256, 256, 16
        $region16: #{tpu_custom_call.1} parent=11 // pred_fallthru
          _
      $region12: #{tpu_custom_call.1} parent=5 // pred_fallthru
        _
      %p167 = scmp.lt.s32.totalorder %s16, 2
      // Predicated region
      $region17: #{tpu_custom_call.1} parent=5 // pred_check
        %p168 = pneg %p167
      $region18: #{tpu_custom_call.1} parent=5 // pred_check_branch
        %170 = sbr.rel (%p168) target = $region20
      $region19: #{tpu_custom_call.1} parent=5 // pred_region
        // Predicated region
        $region21: #{tpu_custom_call.1} parent=19 // pred_check
          %p171 = pneg %p54
        $region22: #{tpu_custom_call.1} parent=19 // pred_check_branch
          %173 = sbr.rel (%p171) target = $region24
        $region23: #{tpu_custom_call.1} parent=19 // pred_region
          %s174 = sadd.s32 %s23, %s24
          %p175 = scmp.lt.s32.totalorder %s174, 1
          %s176 = scalar_select %p175, %s174, 1
          %p177 = scmp.lt.s32.totalorder %s176, 1
          %s178 = scalar_select %p177, %s176, 1
          %s179 = smul.addr %s178, 8
          %s180 = scalar_lea.vmem %s0, %s179
          %s181 = sadd.s32 %s23, %s24
          %p182 = scmp.lt.s32.totalorder %s181, 1
          %s183 = scalar_select %p182, %s181, 1
        $region24: #{tpu_custom_call.1} parent=19 // pred_fallthru
          _
        // Predicated region
        $region25: #{tpu_custom_call.1} parent=19 // pred_check
          %p184 = pneg %p86
        $region26: #{tpu_custom_call.1} parent=19 // pred_check_branch
          %186 = sbr.rel (%p184) target = $region28
        $region27: #{tpu_custom_call.1} parent=19 // pred_region
          %s187 = sand.u32 %s76, 1
          %s188 = scalar_lea.sflag [#allocation4], %s187
          %s189 = sand.u32 %s76, 1
          %s190 = smul.addr %s189, 16
          %s191 = scalar_lea.vmem [#allocation3], %s190
          %s192 = sadd.s32 %s23, %s24
          %p193 = scmp.lt.s32.totalorder %s192, 1
          %s194 = scalar_select %p193, %s192, 1
          %s196 = ssub.s32 256, 256
          %197 = vsyncadd %s188, %s196
          %s198 = smul.addr %s194, 2
          %s199 = smul.addr %s198, 128
          %s200 = scalar_lea.hbm %s1, %s199
          %s202 = sshll.u32 %s191, 4
          %s203 = int_to_ptr.vmem [resolvable:$true] %s202
          %205 = dma.hbm_to_vmem [thread:$0]  %s200, 256, %s203, %s188
        $region28: #{tpu_custom_call.1} parent=19 // pred_fallthru
          _
      $region20: #{tpu_custom_call.1} parent=5 // pred_fallthru
        _
      %p206 = scmp.le.s32.totalorder 1, %s16
      %p207 = scmp.lt.s32.totalorder %s16, 3
      %p208 = pnand %p206, %p207
      %p209 = pneg %p208
      // Predicated region
      $region29: #{tpu_custom_call.1} parent=5 // pred_check
        _
      $region30: #{tpu_custom_call.1} parent=5 // pred_check_branch
        %211 = sbr.rel (%p208) target = $region32
      $region31: #{tpu_custom_call.1} parent=5 // pred_region
        %s212 = ssub.s32 %s16, 1
        %s213 = sand.u32 %s79, 1
        %s214 = scalar_lea.sflag [#allocation4], %s213
        %s215 = sand.u32 %s79, 1
        %s216 = smul.addr %s215, 16
        %s217 = scalar_lea.vmem [#allocation3], %s216
        // Predicated region
        $region33: #{tpu_custom_call.1} parent=31 // pred_check
          %p218 = pneg %p92
        $region34: #{tpu_custom_call.1} parent=31 // pred_check_branch
          %220 = sbr.rel (%p218) target = $region36
        $region35: #{tpu_custom_call.1} parent=31 // pred_region
          %221 = dma.done %s214, 256
        $region36: #{tpu_custom_call.1} parent=31 // pred_fallthru
          _
        // Predicated region
        $region37: #{tpu_custom_call.1} parent=31 // pred_check
          %p222 = pneg %p113
        $region38: #{tpu_custom_call.1} parent=31 // pred_check_branch
          %224 = sbr.rel (%p222) target = $region40
        $region39: #{tpu_custom_call.1} parent=31 // pred_region
          %225 = dma.done [#allocation7], 6144
        $region40: #{tpu_custom_call.1} parent=31 // pred_fallthru
          _
        %s226 = sadd.s32 %s25, %s26
        %p227 = scmp.lt.s32.totalorder %s226, 1
        %s228 = scalar_select %p227, %s226, 1
        %p229 = scmp.lt.s32.totalorder %s228, 1
        %s230 = scalar_select %p229, %s228, 1
        %s231 = smul.addr %s230, 8
        %s232 = scalar_lea.vmem %s0, %s231
        %p233 = pneg %p60
        %p234 = pneg %p57
        %s235 = sand.u32 %s79, 1
        %s236 = scalar_lea.sflag [#allocation4], %s235
        %s237 = sand.u32 %s79, 1
        %s238 = smul.addr %s237, 16
        %s239 = scalar_lea.vmem [#allocation3], %s238
        %p240 = pneg %p92
        %p241 = pneg %p89
        %p242 = pneg %p113
        %p243 = pneg %p110
        %p244 = pneg %p139
        %p245 = pneg %p136
        %s246 = sand.u32 %s126, 1
        %s247 = scalar_lea.sflag [#allocation5], %s246
        %s248 = sand.u32 %s126, 1
        %s249 = smul.addr %s248, 8
        %s250 = scalar_lea.vmem [#allocation8], %s249
        %s251 = sadd.s32 %s25, %s26
        %p252 = scmp.lt.s32.totalorder %s251, 1
        %s253 = scalar_select %p252, %s251, 1
        %p254 = scmp.lt.s32.totalorder %s253, 1
        %s255 = scalar_select %p254, %s253, 1
        %s256 = smul.addr %s255, 8
        %s257 = scalar_lea.vmem %s0, %s256
        %s258 = sadd.s32 %s25, %s26
        %p259 = scmp.lt.s32.totalorder %s258, 1
        %s260 = scalar_select %p259, %s258, 1
        %s261 = sadd.s32 %s25, %s26
        %p262 = scmp.lt.s32.totalorder %s261, 1
        %s263 = scalar_select %p262, %s261, 1
        %p264 = scmp.eq.s32.totalorder %s26, 0
        // Predicated region
        $region41: #{tpu_custom_call.1} parent=31 // pred_check
          %p265 = pneg %p264
        $region42: #{tpu_custom_call.1} parent=31 // pred_check_branch
          %267 = sbr.rel (%p265) target = $region44
        $region43: #{tpu_custom_call.1} parent=31 // pred_region
          %268 = vst [vmem:[#allocation2] sm:$0xff] 0.0
          %vm269 = vcmask 523264
          %270 = vst.msk [vmem:[#allocation2 + $0x8] sm:$0xff] %vm269, 0.0
        $region44: #{tpu_custom_call.1} parent=31 // pred_fallthru
          _
        %v271 = vld [vmem:[%s217] sm:$0xff]
        %v272 = vld [vmem:[%s217 + $0x8] sm:$0xff]
        %v273 = vld [vmem:[%s257] sm:$0xff]
        %s274 = sadd.s32 %s25, %s26
        %s275 = smul.u32 %s274, 8
        %v276 = vlaneseq
        %v277 = vshrl.u32 %v276, 7
        %v278 = vstv %s275
        %v279 = vadd.s32 %v278, %v277
        %vm280 = vcmp.lt.s32.totalorder %v279, 16
        %v281 = vlaneseq
        %v282 = vand.u32 %v281, 127
        %v283 = vadd.s32 %v282, 128
        %284 = vset.pattern.permute.xlu0 0
        %285 = vperm.xlu0 %284, %v273
        %v286 = vpop.permute.xlu0 %285
        %vm287 = vcmp.eq.s32.totalorder %v282, %v286
        %vm288 = vcmp.eq.s32.totalorder %v283, %v286
        %v289 = vsel %vm287, 1, 0
        %v290 = vsel %vm288, 1, 0
        %v291 = vcvt.s32.f32 %v289
        %v292 = vcvt.s32.f32 %v290
        %v293 = vld [vmem:[#allocation6] sm:$0xff]
        %v294 = vld [vmem:[#allocation6 + $0x8] sm:$0xff]
        %v295 = vld [vmem:[#allocation6 + $0x10] sm:$0xff]
        %v296 = vld [vmem:[#allocation6 + $0x18] sm:$0xff]
        %v297 = vld [vmem:[#allocation6 + $0x20] sm:$0xff]
        %v298 = vld [vmem:[#allocation6 + $0x28] sm:$0xff]
        %v299 = vld [vmem:[#allocation6 + $0x30] sm:$0xff]
        %v300 = vld [vmem:[#allocation6 + $0x38] sm:$0xff]
        %v301 = vld [vmem:[#allocation6 + $0x40] sm:$0xff]
        %v302 = vld [vmem:[#allocation6 + $0x48] sm:$0xff]
        %v303 = vld [vmem:[#allocation6 + $0x50] sm:$0xff]
        %v304 = vld [vmem:[#allocation6 + $0x58] sm:$0xff]
        %v305 = vld [vmem:[#allocation6 + $0x60] sm:$0xff]
        %v306 = vld [vmem:[#allocation6 + $0x68] sm:$0xff]
        %v307 = vld [vmem:[#allocation6 + $0x70] sm:$0xff]
        %v308 = vld [vmem:[#allocation6 + $0x78] sm:$0xff]
        %v309 = vld [vmem:[#allocation6 + $0x80] sm:$0xff]
        %v310 = vld [vmem:[#allocation6 + $0x88] sm:$0xff]
        %v311 = vld [vmem:[#allocation6 + $0x90] sm:$0xff]
        %v312 = vld [vmem:[#allocation6 + $0x98] sm:$0xff]
        %v313 = vld [vmem:[#allocation6 + $0xa0] sm:$0xff]
        %v314 = vld [vmem:[#allocation6 + $0xa8] sm:$0xff]
        %v315 = vld [vmem:[#allocation6 + $0xb0] sm:$0xff]
        %v316 = vld [vmem:[#allocation6 + $0xb8] sm:$0xff]
        %v317 = vld [vmem:[#allocation6 + $0xc0] sm:$0xff]
        %v318 = vld [vmem:[#allocation6 + $0xc8] sm:$0xff]
        %v319 = vld [vmem:[#allocation6 + $0xd0] sm:$0xff]
        %v320 = vld [vmem:[#allocation6 + $0xd8] sm:$0xff]
        %v321 = vld [vmem:[#allocation6 + $0xe0] sm:$0xff]
        %v322 = vld [vmem:[#allocation6 + $0xe8] sm:$0xff]
        %v323 = vld [vmem:[#allocation6 + $0xf0] sm:$0xff]
        %v324 = vld [vmem:[#allocation6 + $0xf8] sm:$0xff]
        %v325 = vld [vmem:[#allocation6 + $0x100] sm:$0xff]
        %v326 = vld [vmem:[#allocation6 + $0x108] sm:$0xff]
        %v327 = vld [vmem:[#allocation6 + $0x110] sm:$0xff]
        %v328 = vld [vmem:[#allocation6 + $0x118] sm:$0xff]
        %v329 = vld [vmem:[#allocation6 + $0x120] sm:$0xff]
        %v330 = vld [vmem:[#allocation6 + $0x128] sm:$0xff]
        %v331 = vld [vmem:[#allocation6 + $0x130] sm:$0xff]
        %v332 = vld [vmem:[#allocation6 + $0x138] sm:$0xff]
        %v333 = vld [vmem:[#allocation6 + $0x140] sm:$0xff]
        %v334 = vld [vmem:[#allocation6 + $0x148] sm:$0xff]
        %v335 = vld [vmem:[#allocation6 + $0x150] sm:$0xff]
        %v336 = vld [vmem:[#allocation6 + $0x158] sm:$0xff]
        %v337 = vld [vmem:[#allocation6 + $0x160] sm:$0xff]
        %v338 = vld [vmem:[#allocation6 + $0x168] sm:$0xff]
        %v339 = vld [vmem:[#allocation6 + $0x170] sm:$0xff]
        %v340 = vld [vmem:[#allocation6 + $0x178] sm:$0xff]
        %vm341 = vcmask 523264
        %v343 = vsel %vm341, %v292, 0
        %345 = vmatprep.subr.mxu0 %v324
        %346 = vmatpush1.msra.mxu0 %v323
        %347 = vmatprep.subr.mxu0 %v322
        %348 = vmatpush1.msra.mxu0 %v321
        %349 = vmatprep.subr.mxu0 %v320
        %350 = vmatpush1.msra.mxu0 %v319
        %351 = vmatprep.subr.mxu0 %v318
        %352 = vmatpush1.msra.mxu0 %v317
        %353 = vmatprep.subr.mxu0 %v316
        %354 = vmatpush1.msra.mxu0 %v315
        %355 = vmatprep.subr.mxu0 %v314
        %356 = vmatpush1.msra.mxu0 %v313
        %357 = vmatprep.subr.mxu0 %v312
        %358 = vmatpush1.msra.mxu0 %v311
        %359 = vmatprep.subr.mxu0 %v310
        %360 = vmatpush1.msra.mxu0 %v309
        %361 = vmatprep.subr.mxu0 %v308
        %362 = vmatpush1.msra.mxu0 %v307
        %363 = vmatprep.subr.mxu0 %v306
        %364 = vmatpush1.msra.mxu0 %v305
        %365 = vmatprep.subr.mxu0 %v304
        %366 = vmatpush1.msra.mxu0 %v303
        %367 = vmatprep.subr.mxu0 %v302
        %368 = vmatpush1.msra.mxu0 %v301
        %369 = vmatprep.subr.mxu0 %v300
        %370 = vmatpush1.msra.mxu0 %v299
        %371 = vmatprep.subr.mxu0 %v298
        %372 = vmatpush1.msra.mxu0 %v297
        %373 = vmatprep.subr.mxu0 %v296
        %374 = vmatpush1.msra.mxu0 %v295
        %375 = vmatprep.subr.mxu0 %v294
        %376 = vmatpush1.msra.mxu0 %v293
        %377 = vmatprep.subr.mxu0 0.0
        %378 = vmatpush2.msra.mxu0 0.0
        %379 = vmatprep.subr.mxu0 0.0
        %380 = vmatpush2.msra.mxu0 0.0
        %381 = vmatprep.subr.mxu0 0.0
        %382 = vmatpush2.msra.mxu0 0.0
        %383 = vmatprep.subr.mxu0 0.0
        %384 = vmatpush2.msra.mxu0 0.0
        %385 = vmatprep.subr.mxu0 0.0
        %386 = vmatpush2.msra.mxu0 0.0
        %387 = vmatprep.subr.mxu0 0.0
        %388 = vmatpush2.msra.mxu0 0.0
        %389 = vmatprep.subr.mxu0 0.0
        %390 = vmatpush2.msra.mxu0 0.0
        %391 = vmatprep.subr.mxu0 0.0
        %392 = vmatpush2.msra.mxu0 0.0
        %393 = vmatprep.subr.mxu0 %v340
        %394 = vmatpush2.msra.mxu0 %v339
        %395 = vmatprep.subr.mxu0 %v338
        %396 = vmatpush2.msra.mxu0 %v337
        %397 = vmatprep.subr.mxu0 %v336
        %398 = vmatpush2.msra.mxu0 %v335
        %399 = vmatprep.subr.mxu0 %v334
        %400 = vmatpush2.msra.mxu0 %v333
        %401 = vmatprep.subr.mxu0 %v332
        %402 = vmatpush2.msra.mxu0 %v331
        %403 = vmatprep.subr.mxu0 %v330
        %404 = vmatpush2.msra.mxu0 %v329
        %405 = vmatprep.subr.mxu0 %v328
        %406 = vmatpush2.msra.mxu0 %v327
        %407 = vmatprep.subr.mxu0 %v326
        %408 = vmatpush2.msra.mxu0 %v325
        %409 = vmatprep.mubr.f32.mxu0 %v343
        %410 = vmatmul.mubr.f32.gmra.mxu0 %v291
        %v411 = vpop.f32.mrf.mxu0
        %v412 = vadd.f32 0.0, %v411
        %v413 = vpop.f32.mrf.mxu0
        %v414 = vadd.f32 0.0, %v413
        %415 = vdwg.mxu0
        %v416 = vsel %vm341, %v272, -inf
        %v417 = vmax.f32 %v271, %v416
        %418 = vmax.xlane.f32.xlu0 %v417
        %v419 = vpop.xlane.xlu0 %418
        %v420 = vsub.f32 %v271, %v419
        %v421 = vsub.f32 %v272, %v419
        %v422 = vmul.f32 %v420, 1.442695
        %v423 = vpow.pop %v422
        %v424 = vmul.f32 %v421, 1.442695
        %v425 = vpow.pop %v424
        %v426 = vsel %vm341, %v425, 0.0
        %v427 = vadd.f32 %v423, %v426
        %428 = vadd.xlane.f32.xlu0 %v427
        %v429 = vpop.xlane.xlu0 %428
        %v430 = vlog2.pop %v429
        %v431 = vmul.f32 %v430, 0.6931472
        %v432 = vadd.f32 %v431, %v419
        %v433 = vsub.f32 %v271, %v432
        %v434 = vsub.f32 %v272, %v432
        %v435 = vmul.f32 %v412, %v433
        %v436 = vmul.f32 %v414, %v434
        %v437 = vsel %vm280, 1, 0
        %vm438 = vcmp.eq.s32.totalorder %v437, 1
        %v439 = vsel %vm438, %v435, 0.0
        %v440 = vsel %vm438, %v436, 0.0
        %v441 = vld [vmem:[#allocation2] sm:$0xff]
        %v442 = vld [vmem:[#allocation2 + $0x8] sm:$0xff]
        %v443 = vadd.f32 %v439, 0.0
        %v444 = vadd.f32 %v440, 0.0
        %v445 = vadd.f32 %v441, %v443
        %v446 = vadd.f32 %v442, %v444
        %447 = vst [vmem:[#allocation2] sm:$0xff] %v445
        %448 = vst.msk [vmem:[#allocation2 + $0x8] sm:$0xff] %vm341, %v446
        // Predicated region
        $region45: #{tpu_custom_call.1} parent=31 // pred_check
          %p449 = pneg %p264
        $region46: #{tpu_custom_call.1} parent=31 // pred_check_branch
          %451 = sbr.rel (%p449) target = $region48
        $region47: #{tpu_custom_call.1} parent=31 // pred_region
          %v452 = vld [vmem:[#allocation2] sm:$0xff]
          %v453 = vld [vmem:[#allocation2 + $0x8] sm:$0xff]
          %v454 = vsel %vm341, %v453, 0.0
          %v455 = vadd.f32 %v452, %v454
          %456 = vadd.xlane.f32.xlu0 %v455
          %v457 = vpop.xlane.xlu0 %456
          %v458 = vrot.slane %v457, 4
          %v459 = vadd.f32 %v457, %v458
          %v460 = vrot.slane %v459, 2
          %v461 = vadd.f32 %v459, %v460
          %v462 = vrot.slane %v461, 1
          %v463 = vadd.f32 %v461, %v462
          %s464 = vtos %v463
          %vm465 = vcmp.eq.s32.totalorder %v277, 0
          %vm466 = vcmp.eq.s32.totalorder %v282, 0
          %vm467 = vmand %vm465, %vm466
          %v468 = vstv %s464
          %v469 = vsel %vm467, %v468, 0.0
          %470 = vst [vmem:[%s250] sm:$0xff] %v469
        $region48: #{tpu_custom_call.1} parent=31 // pred_fallthru
          _
        %s471 = sand.u32 %s126, 1
        %s472 = scalar_lea.sflag [#allocation5], %s471
        %s473 = sand.u32 %s126, 1
        %s474 = smul.addr %s473, 8
        %s475 = scalar_lea.vmem [#allocation8], %s474
        // Predicated region
        $region49: #{tpu_custom_call.1} parent=31 // pred_check
          %p476 = pneg %p136
        $region50: #{tpu_custom_call.1} parent=31 // pred_check_branch
          %478 = sbr.rel (%p476) target = $region52
        $region51: #{tpu_custom_call.1} parent=31 // pred_region
          %s480 = ssub.s32 128, 128
          %481 = vsyncadd %s472, %s480
          %s482 = smul.addr %s25, 128
          %s483 = scalar_lea.hbm %s3, %s482
          %s485 = sshll.u32 %s475, 4
          %s486 = int_to_ptr.vmem [resolvable:$true] %s485
          %488 = dma.vmem_to_hbm [thread:$0]  %s486, 128, %s483, %s472
        $region52: #{tpu_custom_call.1} parent=31 // pred_fallthru
          _
      $region32: #{tpu_custom_call.1} parent=5 // pred_fallthru
        _
      %p489 = scmp.le.s32.totalorder 2, %s16
      // Predicated region
      $region53: #{tpu_custom_call.1} parent=5 // pred_check
        %p490 = pneg %p489
      $region54: #{tpu_custom_call.1} parent=5 // pred_check_branch
        %492 = sbr.rel (%p490) target = $region56
      $region55: #{tpu_custom_call.1} parent=5 // pred_region
        %s493 = ssub.s32 %s16, 2
        // Predicated region
        $region57: #{tpu_custom_call.1} parent=55 // pred_check
          %p494 = pneg %p142
        $region58: #{tpu_custom_call.1} parent=55 // pred_check_branch
          %496 = sbr.rel (%p494) target = $region60
        $region59: #{tpu_custom_call.1} parent=55 // pred_region
          %s497 = sand.u32 %s127, 1
          %s498 = scalar_lea.sflag [#allocation5], %s497
          %s499 = sand.u32 %s127, 1
          %s500 = smul.addr %s499, 8
          %s501 = scalar_lea.vmem [#allocation8], %s500
          %502 = dma.done %s498, 128
        $region60: #{tpu_custom_call.1} parent=55 // pred_fallthru
          _
      $region56: #{tpu_custom_call.1} parent=5 // pred_fallthru
        _
    $region6: #{tpu_custom_call.1} parent=1 // loop_footer
      %s20 = sadd.s32 1, %s16
    $region7: #{tpu_custom_call.1} parent=1 // loop_footer_branch
      %15 = sbr.rel target = $region3
    $region8: #{tpu_custom_call.1} parent=1 // loop_exit
      _
    %503 = vsyncpa [#allocation4], 1
    %s504 = scalar_lea.sflag [#allocation4], 1
    %505 = vsyncpa %s504, 1
    %506 = vsyncpa [#allocation7], 1
    %507 = vsyncpa [#allocation5], 1
    %s508 = scalar_lea.sflag [#allocation5], 1
    %509 = vsyncpa %s508, 1

</llo_original>
